<compile_context>
chip_gen: v5e
topology: v5e:2x2
jax: 0.10.0
libtpu: 0.0.40
codegen_flags: <defaults>
</compile_context>

<pallas_src>
import jax
import jax.numpy as jnp
from jax.experimental import pallas as pl
from jax.experimental.pallas import tpu as pltpu


def _gram_kernel(x_ref, y_ref, o_ref, acc_ref):
    """One (tm, tn) tile of X @ X.T, accumulated over the K grid axis."""

    @pl.when(pl.program_id(2) == 0)
    def _():
        acc_ref[...] = jnp.zeros_like(acc_ref)

    # Contract the trailing feature axis of both operands: (tm,tk)·(tn,tk) -> (tm,tn)
    acc_ref[...] += jax.lax.dot_general(
        x_ref[...],
        y_ref[...],
        dimension_numbers=(((1,), (1,)), ((), ())),
        preferred_element_type=jnp.float32,
    )

    @pl.when(pl.program_id(2) == pl.num_programs(2) - 1)
    def _():
        o_ref[...] = acc_ref[...].astype(o_ref.dtype)


def _round_up(x, m):
    return ((x + m - 1) // m) * m


def _gram_pallas(x: jax.Array, *, tile_m: int = 128, tile_k: int = 256) -> jax.Array:
    """Returns X @ X.T in float32 for X of shape (M, K), any float dtype."""
    M, K = x.shape
    tm = min(tile_m, _round_up(M, 8))
    tk = min(tile_k, _round_up(K, 128))
    Mp = _round_up(M, tm)
    Kp = _round_up(K, tk)
    if (Mp, Kp) != (M, K):
        x = jnp.pad(x, ((0, Mp - M), (0, Kp - K)))

    grid = (Mp // tm, Mp // tm, Kp // tk)
    itemsize = jnp.dtype(x.dtype).itemsize

    out = pl.pallas_call(
        _gram_kernel,
        out_shape=jax.ShapeDtypeStruct((Mp, Mp), jnp.float32),
        grid_spec=pltpu.PrefetchScalarGridSpec(
            num_scalar_prefetch=0,
            grid=grid,
            in_specs=[
                pl.BlockSpec((tm, tk), lambda i, j, k: (i, k)),
                pl.BlockSpec((tm, tk), lambda i, j, k: (j, k)),
            ],
            out_specs=pl.BlockSpec((tm, tm), lambda i, j, k: (i, j)),
            scratch_shapes=[pltpu.VMEM((tm, tm), jnp.float32)],
        ),
        compiler_params=pltpu.CompilerParams(
            dimension_semantics=("parallel", "parallel", "arbitrary"),
        ),
        cost_estimate=pl.CostEstimate(
            flops=2 * Mp * Mp * Kp,
            transcendentals=0,
            bytes_accessed=2 * Mp * Kp * itemsize + Mp * Mp * 4,
        ),
    )(x, x)
    return out[:M, :M]


def inter_class_pairwise_prototype_similarity(prototypes_matrix: jax.Array) -> jax.Array:
    """JAX/Pallas equivalent of _inter_class_pairwise_prototype_similarity.

    prototypes_matrix: (num_classes, protos_per_class, latent, H, W)
    returns: (num_classes, num_classes, protos_per_class**2) float32
    """
    C, P, D, H, W = prototypes_matrix.shape
    flat = prototypes_matrix.reshape(C * P, D * H * W)
    simi = _gram_pallas(flat)  # == einsum('ijkl,mjkl->im', flat4d, flat4d)
    simi = simi.reshape(C, P, C, P).transpose(0, 2, 1, 3).reshape(C, C, P * P)
    return simi


def classification_boundary_loss_forward(
    prototype_tensors: jax.Array,
    num_classes: int,
    num_prototypes_per_class: int,
    class_specific: bool = True,
):
    """Mirrors ClassificationBoundaryLoss.forward up to the abstract hook.

    Returns (simi_dot, I_operator_c).  When class_specific is False the torch
    module contributes 0.0 and computes nothing, mirrored by (None, None).
    """
    if not class_specific:
        return None, None

    _, D, H, W = prototype_tensors.shape
    prototypes_matrix = prototype_tensors.reshape(
        num_classes, num_prototypes_per_class, D, H, W
    )
    I_operator_c = 1.0 - jnp.eye(num_classes, dtype=jnp.float32)
    simi_dot = inter_class_pairwise_prototype_similarity(prototypes_matrix)
    # TODO(synk): _boundary_loss is abstract (NotImplementedError) in the reference
    # module; subclasses define the scalar reduction over (simi_dot, I_operator_c).
    return simi_dot, I_operator_c


if __name__ == "__main__":
    key = jax.random.PRNGKey(0)

    # Small shapes consistent with the module: 4 classes, 2 prototypes/class,
    # latent 32, 4x4 prototype spatial extent.
    num_classes, protos_per_class = 4, 2
    latent, H, W = 32, 4, 4

    prototype_tensors = jax.random.normal(
        key, (num_classes * protos_per_class, latent, H, W), dtype=jnp.float32
    )

    simi_dot, I_operator_c = classification_boundary_loss_forward(
        prototype_tensors, num_classes, protos_per_class, class_specific=True
    )
    jax.block_until_ready(simi_dot)

    # Pure-JAX reference of the torch forward (up to the abstract _boundary_loss).
    pm = prototype_tensors.reshape(num_classes, protos_per_class, latent, H, W)
    flat4d = pm.reshape(num_classes * protos_per_class, latent, H, W)
    ref = jnp.einsum("ijkl,mjkl->im", flat4d, flat4d)
    ref = ref.reshape(num_classes, protos_per_class, num_classes, protos_per_class)
    ref = ref.transpose(0, 2, 1, 3).reshape(num_classes, num_classes, -1)

    assert jnp.allclose(simi_dot, ref, atol=1e-4, rtol=1e-5), (simi_dot, ref)
    assert jnp.allclose(I_operator_c, 1.0 - jnp.eye(num_classes)), I_operator_c

    print("KERNEL_OK")
</pallas_src>

<mosaic_0001>
module attributes {stable_mosaic.version = 11 : i64} {
  func.func @_gram_kernel(%arg0: i32, %arg1: i32, %arg2: i32, %arg3: memref<8x256xf32, #tpu.memory_space<vmem>>, %arg4: memref<8x256xf32, #tpu.memory_space<vmem>>, %arg5: memref<8x8xf32, #tpu.memory_space<vmem>>, %arg6: memref<8x8xf32, #tpu.memory_space<vmem>>) attributes {dimension_semantics = [#tpu.dimension_semantics<parallel>, #tpu.dimension_semantics<parallel>, #tpu.dimension_semantics<arbitrary>], iteration_bounds = array<i64: 1, 1, 2>, scalar_prefetch = 0 : i64, scratch_operands = 1 : i64, tpu.core_type = #tpu.core_type<tc>, window_params = [{transform_indices = @transform_0, window_bounds = array<i64: 8, 256>}, {transform_indices = @transform_1, window_bounds = array<i64: 8, 256>}, {transform_indices = @transform_2, window_bounds = array<i64: 8, 8>}]} {
    %c0_i32 = arith.constant 0 : i32
    %0 = arith.cmpi eq, %arg2, %c0_i32 : i32
    %1 = arith.extui %0 : i1 to i32
    %c0_i32_0 = arith.constant 0 : i32
    %2 = arith.cmpi ne, %1, %c0_i32_0 : i32
    scf.if %2 {
      %cst_9 = arith.constant 0.000000e+00 : f32
      %12 = vector.broadcast %cst_9 : f32 to vector<8x8xf32>
      %c0_10 = arith.constant 0 : index
      %c0_11 = arith.constant 0 : index
      %13 = vector.load %arg6[%c0_10, %c0_11] : memref<8x8xf32, #tpu.memory_space<vmem>>, vector<8x8xf32>
      tpu.vector_store %arg6[%c0_10, %c0_11], %12 {strides = array<i32>} : memref<8x8xf32, #tpu.memory_space<vmem>>, vector<8x8xf32>,
    } else {
    }
    %c0 = arith.constant 0 : index
    %c0_1 = arith.constant 0 : index
    %3 = vector.load %arg6[%c0, %c0_1] : memref<8x8xf32, #tpu.memory_space<vmem>>, vector<8x8xf32>
    %c0_2 = arith.constant 0 : index
    %c0_3 = arith.constant 0 : index
    %4 = vector.load %arg3[%c0_2, %c0_3] : memref<8x256xf32, #tpu.memory_space<vmem>>, vector<8x256xf32>
    %c0_4 = arith.constant 0 : index
    %c0_5 = arith.constant 0 : index
    %5 = vector.load %arg4[%c0_4, %c0_5] : memref<8x256xf32, #tpu.memory_space<vmem>>, vector<8x256xf32>
    %cst = arith.constant dense<0.000000e+00> : vector<8x8xf32>
    %6 = tpu.matmul %4, %5, %cst {dimension_numbers = #tpu.dot_dimension_numbers<[1], [1], [0], [0], [0, 0, 1, 0], [], []>} : vector<8x256xf32>, vector<8x256xf32>, vector<8x8xf32> -> vector<8x8xf32>
    %7 = arith.addf %3, %6 : vector<8x8xf32>
    %c0_6 = arith.constant 0 : index
    %c0_7 = arith.constant 0 : index
    %8 = vector.load %arg6[%c0_6, %c0_7] : memref<8x8xf32, #tpu.memory_space<vmem>>, vector<8x8xf32>
    tpu.vector_store %arg6[%c0_6, %c0_7], %7 {strides = array<i32>} : memref<8x8xf32, #tpu.memory_space<vmem>>, vector<8x8xf32>,
    %c1_i32 = arith.constant 1 : i32
    %9 = arith.cmpi eq, %arg2, %c1_i32 : i32
    %10 = arith.extui %9 : i1 to i32
    %c0_i32_8 = arith.constant 0 : i32
    %11 = arith.cmpi ne, %10, %c0_i32_8 : i32
    scf.if %11 {
      %c0_9 = arith.constant 0 : index
      %c0_10 = arith.constant 0 : index
      %12 = vector.load %arg6[%c0_9, %c0_10] : memref<8x8xf32, #tpu.memory_space<vmem>>, vector<8x8xf32>
      %c0_11 = arith.constant 0 : index
      %c0_12 = arith.constant 0 : index
      %13 = vector.load %arg5[%c0_11, %c0_12] : memref<8x8xf32, #tpu.memory_space<vmem>>, vector<8x8xf32>
      tpu.vector_store %arg5[%c0_11, %c0_12], %12 {strides = array<i32>} : memref<8x8xf32, #tpu.memory_space<vmem>>, vector<8x8xf32>,
    } else {
    }
    return
  }
  func.func @transform_0(%arg0: i32, %arg1: i32, %arg2: i32) -> (i32, i32) {
    %c0_i32 = arith.constant 0 : i32
    return %arg0, %arg2 : i32, i32
  }
  func.func @transform_1(%arg0: i32, %arg1: i32, %arg2: i32) -> (i32, i32) {
    %c0_i32 = arith.constant 0 : i32
    return %arg1, %arg2 : i32, i32
  }
  func.func @transform_2(%arg0: i32, %arg1: i32, %arg2: i32) -> (i32, i32) {
    %c0_i32 = arith.constant 0 : i32
    return %arg0, %arg1 : i32, i32
  }
}

</mosaic_0001>

<llo_original>
// kernel: tpu_custom_call.1
$region0: #{tpu_custom_call.1}
  #allocation0 [shape = 'u32[]', space=smem, size = 0x4, offset = 0x4, fixed_abs, tag = 'smem constant byte address 0x4 - core index']
  #allocation1 [shape = 'u32[72,128]{1,0:T(1,128)}', space=vmem, size = 0x9000, scoped, tag = 'internal scratch']
  #allocation2 [shape = 'f32[8,8]{1,0:T(8,128)}', space=vmem, size = 0x1000, scoped, tag = 'scratch operand']
  %s0 = inlined_call_operand.hbm [shape: f32[8,512], index: 0, kind: input, shape index: {}]
  %s1 = inlined_call_operand.hbm [shape: f32[8,512], index: 1, kind: input, shape index: {}]
  %s2 = inlined_call_operand.hbm [shape: f32[8,8], index: 2, kind: output, shape index: {}]
  %s3 = sld [smem:[#allocation0]]
  $region57: #{tpu_custom_call.1} parent=0
    _
  %s5 = ssub.s32 1, %s3
  %s6 = scalar_select 0, %s5, %s3
  $region1: #{tpu_custom_call.1} parent=0
    #allocation3 [shape = 'u8[16384]{0}', space=vmem, size = 0x4000, scoped, tag = 'input window, operand 0']
    #allocation4 [shape = 's32[2]{0}', space=sflag, size = 0x8, scoped, tag = 'scoped memory for tpu_custom_call.1']
    #allocation5 [shape = 's32[2]{0}', space=sflag, size = 0x8, scoped, tag = 'scoped memory for tpu_custom_call.1']
    #allocation6 [shape = 'u8[16384]{0}', space=vmem, size = 0x4000, scoped, tag = 'input window, operand 1']
    #allocation7 [shape = 's32[2]{0}', space=sflag, size = 0x8, scoped, tag = 'scoped memory for tpu_custom_call.1']
    #allocation8 [shape = 'u8[4096]{0}', space=vmem, size = 0x1000, scoped, tag = 'output window, operand 0, single buffered']
    %7 = vsyncpa [#allocation4], 0
    %s8 = scalar_lea.sflag [#allocation4], 1
    %9 = vsyncpa %s8, 0
    %10 = vsyncpa [#allocation7], 0
    %s11 = scalar_lea.sflag [#allocation7], 1
    %12 = vsyncpa %s11, 0
    %13 = vsyncpa [#allocation5], 0
    loop: start=0, step=1, limit=4
    $region2: #{tpu_custom_call.1} parent=1 // loop_pre_header
      _
    $region3: #{tpu_custom_call.1} parent=1 // loop_header
      %s15 = sphi 0, %s19
      %p16 = scmp.ge.s32.totalorder %s15, 4
      %s22 = sphi 0, %s41
      %s23 = sphi 0, %s37
      %s24 = sphi 0, %s33
      %s25 = sphi 0, %s22
      %s26 = sphi 0, %s23
      %s27 = sphi 0, %s24
      %s28 = sphi 0, %s25
      %s29 = sphi 0, %s26
      %s30 = sphi 0, %s27
      %s46 = sphi 0, %s48
      %s49 = sphi 0, %s46
      %s50 = sphi 0, %s49
      %s66 = sphi 0, %s50
      %s74 = sphi 0, %s76
      %s77 = sphi 0, %s74
      %s78 = sphi 0, %s77
      %s94 = sphi 0, %s78
      %s102 = sphi 0, %s104
      %s105 = sphi 0, %s102
      %s106 = sphi 0, %s105
      %s122 = sphi 0, %s106
    $region4: #{tpu_custom_call.1} parent=1 // loop_header_branch
      %18 = sbr.rel (%p16) target = $region8
    $region5: #{tpu_custom_call.1} parent=1 // loop_body
      %s20 = ssub.s32 %s15, 1
      %s21 = ssub.s32 %s15, 2
      %s31 = sadd.s32 1, %s24
      %p32 = scmp.ge.s32.totalorder %s31, 2
      %s33 = scalar_select %p32, 0, %s31
      %s34 = sadd.s32 1, %s23
      %s35 = scalar_select %p32, %s34, %s23
      %p36 = scmp.ge.s32.totalorder %s35, 1
      %s37 = scalar_select %p36, 0, %s35
      %s38 = sadd.s32 1, %s22
      %s39 = scalar_select %p36, %s38, %s22
      %p40 = scmp.ge.s32.totalorder %s39, 1
      %s41 = scalar_select %p40, 0, %s39
      %s42 = ssub.s32 %s22, %s41
      %s43 = ssub.s32 %s24, %s33
      %s44 = sor.u32 %s42, %s43
      %p45 = scmp.eq.s32.totalorder %s44, 0
      %s47 = sadd.s32 %s46, 1
      %s48 = scalar_select %p45, %s46, %s47
      %p51 = pneg %p45
      %p52 = scmp.eq.s32.totalorder %s15, 1
      %p53 = por %p51, %p52
      %p54 = scmp.ne.s32.totalorder %s46, %s49
      %p55 = scmp.eq.s32.totalorder %s15, 0
      %p56 = por %p54, %p55
      %p57 = scmp.ne.s32.totalorder %s46, %s49
      %p58 = scmp.eq.s32.totalorder %s20, 1
      %p59 = por %p57, %p58
      %p60 = scmp.ne.s32.totalorder %s49, %s50
      %p61 = scmp.eq.s32.totalorder %s20, 0
      %p62 = por %p60, %p61
      %p63 = scmp.ne.s32.totalorder %s49, %s50
      %p64 = scmp.eq.s32.totalorder %s21, 1
      %p65 = por %p63, %p64
      %p67 = scmp.ne.s32.totalorder %s50, %s66
      %p68 = scmp.eq.s32.totalorder %s21, 0
      %p69 = por %p67, %p68
      %s70 = ssub.s32 %s23, %s37
      %s71 = ssub.s32 %s24, %s33
      %s72 = sor.u32 %s70, %s71
      %p73 = scmp.eq.s32.totalorder %s72, 0
      %s75 = sadd.s32 %s74, 1
      %s76 = scalar_select %p73, %s74, %s75
      %p79 = pneg %p73
      %p80 = scmp.eq.s32.totalorder %s15, 1
      %p81 = por %p79, %p80
      %p82 = scmp.ne.s32.totalorder %s74, %s77
      %p83 = scmp.eq.s32.totalorder %s15, 0
      %p84 = por %p82, %p83
      %p85 = scmp.ne.s32.totalorder %s74, %s77
      %p86 = scmp.eq.s32.totalorder %s20, 1
      %p87 = por %p85, %p86
      %p88 = scmp.ne.s32.totalorder %s77, %s78
      %p89 = scmp.eq.s32.totalorder %s20, 0
      %p90 = por %p88, %p89
      %p91 = scmp.ne.s32.totalorder %s77, %s78
      %p92 = scmp.eq.s32.totalorder %s21, 1
      %p93 = por %p91, %p92
      %p95 = scmp.ne.s32.totalorder %s78, %s94
      %p96 = scmp.eq.s32.totalorder %s21, 0
      %p97 = por %p95, %p96
      %s98 = ssub.s32 %s22, %s41
      %s99 = ssub.s32 %s23, %s37
      %s100 = sor.u32 %s98, %s99
      %p101 = scmp.eq.s32.totalorder %s100, 0
      %s103 = sadd.s32 %s102, 1
      %s104 = scalar_select %p101, %s102, %s103
      %p107 = pneg %p101
      %p108 = scmp.eq.s32.totalorder %s15, 1
      %p109 = por %p107, %p108
      %p110 = scmp.ne.s32.totalorder %s102, %s105
      %p111 = scmp.eq.s32.totalorder %s15, 0
      %p112 = por %p110, %p111
      %p113 = scmp.ne.s32.totalorder %s102, %s105
      %p114 = scmp.eq.s32.totalorder %s20, 1
      %p115 = por %p113, %p114
      %p116 = scmp.ne.s32.totalorder %s105, %s106
      %p117 = scmp.eq.s32.totalorder %s20, 0
      %p118 = por %p116, %p117
      %p119 = scmp.ne.s32.totalorder %s105, %s106
      %p120 = scmp.eq.s32.totalorder %s21, 1
      %p121 = por %p119, %p120
      %p123 = scmp.ne.s32.totalorder %s106, %s122
      %p124 = scmp.eq.s32.totalorder %s21, 0
      %p125 = por %p123, %p124
      %p126 = scmp.le.s32.totalorder 1, %s15
      %p127 = scmp.lt.s32.totalorder %s15, 3
      %p128 = pnand %p126, %p127
      %p129 = pneg %p128
      // Predicated region
      $region9: #{tpu_custom_call.1} parent=5 // pred_check
        _
      $region10: #{tpu_custom_call.1} parent=5 // pred_check_branch
        %131 = sbr.rel (%p128) target = $region12
      $region11: #{tpu_custom_call.1} parent=5 // pred_region
        %s132 = ssub.s32 %s15, 1
      $region12: #{tpu_custom_call.1} parent=5 // pred_fallthru
        _
      %p133 = scmp.lt.s32.totalorder %s15, 2
      // Predicated region
      $region13: #{tpu_custom_call.1} parent=5 // pred_check
        %p134 = pneg %p133
      $region14: #{tpu_custom_call.1} parent=5 // pred_check_branch
        %136 = sbr.rel (%p134) target = $region16
      $region15: #{tpu_custom_call.1} parent=5 // pred_region
        // Predicated region
        $region17: #{tpu_custom_call.1} parent=15 // pred_check
          %p137 = pneg %p56
        $region18: #{tpu_custom_call.1} parent=15 // pred_check_branch
          %139 = sbr.rel (%p137) target = $region20
        $region19: #{tpu_custom_call.1} parent=15 // pred_region
          %s140 = sand.u32 %s46, 1
          %s141 = scalar_lea.sflag [#allocation4], %s140
          %s142 = sand.u32 %s46, 1
          %s143 = smul.addr %s142, 16
          %s144 = scalar_lea.vmem [#allocation3], %s143
          %s145 = smul.u32 2, %s24
          %147 = vsyncadd %s141, 0
          %s148 = smul.addr %s22, 4
          %s149 = sadd.s32 %s145, %s148
          %s150 = smul.addr %s149, 8
          %s151 = scalar_lea.hbm %s0, %s150
          %s153 = sshll.u32 %s151, 4
          %s154 = int_to_ptr.hbm [resolvable:$true] %s153
          %s155 = sshll.u32 %s144, 4
          %s156 = int_to_ptr.vmem [resolvable:$true] %s155
          %158 = dma.hbm_to_vmem [thread:$0]  %s154, 256, %s156, %s141
        $region20: #{tpu_custom_call.1} parent=15 // pred_fallthru
          _
        // Predicated region
        $region21: #{tpu_custom_call.1} parent=15 // pred_check
          %p159 = pneg %p84
        $region22: #{tpu_custom_call.1} parent=15 // pred_check_branch
          %161 = sbr.rel (%p159) target = $region24
        $region23: #{tpu_custom_call.1} parent=15 // pred_region
          %s162 = sand.u32 %s74, 1
          %s163 = scalar_lea.sflag [#allocation7], %s162
          %s164 = sand.u32 %s74, 1
          %s165 = smul.addr %s164, 16
          %s166 = scalar_lea.vmem [#allocation6], %s165
          %s167 = smul.u32 2, %s24
          %169 = vsyncadd %s163, 0
          %s170 = smul.addr %s23, 4
          %s171 = sadd.s32 %s167, %s170
          %s172 = smul.addr %s171, 8
          %s173 = scalar_lea.hbm %s1, %s172
          %s175 = sshll.u32 %s173, 4
          %s176 = int_to_ptr.hbm [resolvable:$true] %s175
          %s177 = sshll.u32 %s166, 4
          %s178 = int_to_ptr.vmem [resolvable:$true] %s177
          %180 = dma.hbm_to_vmem [thread:$0]  %s176, 256, %s178, %s163
        $region24: #{tpu_custom_call.1} parent=15 // pred_fallthru
          _
      $region16: #{tpu_custom_call.1} parent=5 // pred_fallthru
        _
      %p181 = scmp.le.s32.totalorder 1, %s15
      %p182 = scmp.lt.s32.totalorder %s15, 3
      %p183 = pnand %p181, %p182
      %p184 = pneg %p183
      // Predicated region
      $region25: #{tpu_custom_call.1} parent=5 // pred_check
        _
      $region26: #{tpu_custom_call.1} parent=5 // pred_check_branch
        %186 = sbr.rel (%p183) target = $region28
      $region27: #{tpu_custom_call.1} parent=5 // pred_region
        %s187 = ssub.s32 %s15, 1
        %s188 = sand.u32 %s49, 1
        %s189 = scalar_lea.sflag [#allocation4], %s188
        %s190 = sand.u32 %s49, 1
        %s191 = smul.addr %s190, 16
        %s192 = scalar_lea.vmem [#allocation3], %s191
        // Predicated region
        $region29: #{tpu_custom_call.1} parent=27 // pred_check
          %p193 = pneg %p62
        $region30: #{tpu_custom_call.1} parent=27 // pred_check_branch
          %195 = sbr.rel (%p193) target = $region32
        $region31: #{tpu_custom_call.1} parent=27 // pred_region
          %197 = dma.done %s189, 256
        $region32: #{tpu_custom_call.1} parent=27 // pred_fallthru
          _
        %s198 = sand.u32 %s77, 1
        %s199 = scalar_lea.sflag [#allocation7], %s198
        %s200 = sand.u32 %s77, 1
        %s201 = smul.addr %s200, 16
        %s202 = scalar_lea.vmem [#allocation6], %s201
        // Predicated region
        $region33: #{tpu_custom_call.1} parent=27 // pred_check
          %p203 = pneg %p90
        $region34: #{tpu_custom_call.1} parent=27 // pred_check_branch
          %205 = sbr.rel (%p203) target = $region36
        $region35: #{tpu_custom_call.1} parent=27 // pred_region
          %207 = dma.done %s199, 256
        $region36: #{tpu_custom_call.1} parent=27 // pred_fallthru
          _
        %s208 = sand.u32 %s49, 1
        %s209 = scalar_lea.sflag [#allocation4], %s208
        %s210 = sand.u32 %s49, 1
        %s211 = smul.addr %s210, 16
        %s212 = scalar_lea.vmem [#allocation3], %s211
        %p213 = pneg %p62
        %p214 = pneg %p59
        %s215 = sand.u32 %s77, 1
        %s216 = scalar_lea.sflag [#allocation7], %s215
        %s217 = sand.u32 %s77, 1
        %s218 = smul.addr %s217, 16
        %s219 = scalar_lea.vmem [#allocation6], %s218
        %p220 = pneg %p90
        %p221 = pneg %p87
        %p222 = pneg %p118
        %p223 = pneg %p115
        %s224 = smul.u32 2, %s27
        %s225 = smul.u32 2, %s27
        %p226 = scmp.eq.s32.totalorder %s27, 0
        // Predicated region
        $region37: #{tpu_custom_call.1} parent=27 // pred_check
          %p227 = pneg %p226
        $region38: #{tpu_custom_call.1} parent=27 // pred_check_branch
          %229 = sbr.rel (%p227) target = $region40
        $region39: #{tpu_custom_call.1} parent=27 // pred_region
          %vm230 = vcmask 64512
          %231 = vst.msk [vmem:[#allocation2] sm:$0xff] %vm230, 0.0
        $region40: #{tpu_custom_call.1} parent=27 // pred_fallthru
          _
        %v232 = vld [vmem:[#allocation2] sm:$0xff]
        %v233 = vld [vmem:[%s192] sm:$0xff]
        %v234 = vld [vmem:[%s192 + $0x8] sm:$0xff]
        %v235 = vld [vmem:[%s202] sm:$0xff]
        %v236 = vld [vmem:[%s202 + $0x8] sm:$0xff]
        %237 = vmatpush.xpose.msra.mxu0 0.0
        %238 = vmatpush.xpose.msra.mxu0 0.0
        %239 = vmatpush.xpose.msra.mxu0 0.0
        %240 = vmatpush.xpose.msra.mxu0 0.0
        %241 = vmatpush.xpose.msra.mxu0 0.0
        %242 = vmatpush.xpose.msra.mxu0 0.0
        %243 = vmatpush.xpose.msra.mxu0 0.0
        %244 = vmatpush.xpose.msra.mxu0 0.0
        %245 = vmatpush.xpose.msra.mxu0 0.0
        %246 = vmatpush.xpose.msra.mxu0 0.0
        %247 = vmatpush.xpose.msra.mxu0 0.0
        %248 = vmatpush.xpose.msra.mxu0 0.0
        %249 = vmatpush.xpose.msra.mxu0 0.0
        %250 = vmatpush.xpose.msra.mxu0 0.0
        %251 = vmatpush.xpose.msra.mxu0 0.0
        %252 = vmatpush.xpose.msra.mxu0 %v235
        %253 = vmatmul.f32.gmra.mxu0 %v233
        %v254 = vpop.f32.mrf.mxu0
        %v255 = vadd.f32 0.0, %v254
        %256 = vdwg.mxu0
        %257 = vmatpush.xpose.msra.mxu0 0.0
        %258 = vmatpush.xpose.msra.mxu0 0.0
        %259 = vmatpush.xpose.msra.mxu0 0.0
        %260 = vmatpush.xpose.msra.mxu0 0.0
        %261 = vmatpush.xpose.msra.mxu0 0.0
        %262 = vmatpush.xpose.msra.mxu0 0.0
        %263 = vmatpush.xpose.msra.mxu0 0.0
        %264 = vmatpush.xpose.msra.mxu0 0.0
        %265 = vmatpush.xpose.msra.mxu0 0.0
        %266 = vmatpush.xpose.msra.mxu0 0.0
        %267 = vmatpush.xpose.msra.mxu0 0.0
        %268 = vmatpush.xpose.msra.mxu0 0.0
        %269 = vmatpush.xpose.msra.mxu0 0.0
        %270 = vmatpush.xpose.msra.mxu0 0.0
        %271 = vmatpush.xpose.msra.mxu0 0.0
        %272 = vmatpush.xpose.msra.mxu0 %v236
        %273 = vmatmul.f32.gmra.mxu0 %v234
        %v274 = vpop.f32.mrf.mxu0
        %v275 = vadd.f32 %v255, %v274
        %276 = vdwg.mxu0
        %v277 = vadd.f32 %v232, %v275
        %vm278 = vcmask 64512
        %279 = vst.msk [vmem:[#allocation2] sm:$0xff] %vm278, %v277
        %p280 = scmp.eq.s32.totalorder %s27, 1
        // Predicated region
        $region41: #{tpu_custom_call.1} parent=27 // pred_check
          %p281 = pneg %p280
        $region42: #{tpu_custom_call.1} parent=27 // pred_check_branch
          %283 = sbr.rel (%p281) target = $region44
        $region43: #{tpu_custom_call.1} parent=27 // pred_region
          %v284 = vld [vmem:[#allocation2] sm:$0xff]
          %285 = vst.msk [vmem:[#allocation8] sm:$0xff] %vm278, %v284
        $region44: #{tpu_custom_call.1} parent=27 // pred_fallthru
          _
        // Predicated region
        $region45: #{tpu_custom_call.1} parent=27 // pred_check
          %p286 = pneg %p115
        $region46: #{tpu_custom_call.1} parent=27 // pred_check_branch
          %288 = sbr.rel (%p286) target = $region48
        $region47: #{tpu_custom_call.1} parent=27 // pred_region
          %290 = vsyncadd [#allocation5], 0
          %s291 = sadd.s32 %s26, %s25
          %s292 = smul.addr %s291, 8
          %s293 = scalar_lea.hbm %s2, %s292
          %s295 = sshll.u32 [#allocation8], 4
          %s296 = int_to_ptr.vmem [resolvable:$true] %s295
          %s297 = sshll.u32 %s293, 4
          %s298 = int_to_ptr.hbm [resolvable:$true] %s297
          %300 = dma.vmem_to_hbm [thread:$0]  %s296, 128, %s298, [#allocation5]
        $region48: #{tpu_custom_call.1} parent=27 // pred_fallthru
          _
        // Predicated region
        $region49: #{tpu_custom_call.1} parent=27 // pred_check
          %p301 = pneg %p115
        $region50: #{tpu_custom_call.1} parent=27 // pred_check_branch
          %303 = sbr.rel (%p301) target = $region52
        $region51: #{tpu_custom_call.1} parent=27 // pred_region
          %305 = dma.done [#allocation5], 128
        $region52: #{tpu_custom_call.1} parent=27 // pred_fallthru
          _
      $region28: #{tpu_custom_call.1} parent=5 // pred_fallthru
        _
      %p306 = scmp.le.s32.totalorder 2, %s15
      // Predicated region
      $region53: #{tpu_custom_call.1} parent=5 // pred_check
        %p307 = pneg %p306
      $region54: #{tpu_custom_call.1} parent=5 // pred_check_branch
        %309 = sbr.rel (%p307) target = $region56
      $region55: #{tpu_custom_call.1} parent=5 // pred_region
        %s310 = ssub.s32 %s15, 2
      $region56: #{tpu_custom_call.1} parent=5 // pred_fallthru
        _
    $region6: #{tpu_custom_call.1} parent=1 // loop_footer
      %s19 = sadd.s32 1, %s15
    $region7: #{tpu_custom_call.1} parent=1 // loop_footer_branch
      %14 = sbr.rel target = $region3
    $region8: #{tpu_custom_call.1} parent=1 // loop_exit
      _
    %311 = vsyncpa [#allocation4], 1
    %s312 = scalar_lea.sflag [#allocation4], 1
    %313 = vsyncpa %s312, 1
    %314 = vsyncpa [#allocation7], 1
    %s315 = scalar_lea.sflag [#allocation7], 1
    %316 = vsyncpa %s315, 1
    %317 = vsyncpa [#allocation5], 1
    %s318 = scalar_lea.sflag [#allocation5], 1
    %319 = vsyncpa %s318, 1

</llo_original>
